<compile_context>
chip_gen: v7x
topology: tpu7x:2x2x1
jax: 0.10.0
libtpu: 0.0.40
codegen_flags: <defaults>
</compile_context>

<pallas_src>
import functools

import jax
import jax.numpy as jnp
from jax.experimental import pallas as pl
from jax.experimental.pallas import tpu as pltpu


def _round_up(x, m):
    return (x + m - 1) // m * m


def variable_conv_kernel(x_ref, w_ref, cmask_ref, vmask_ref, o_ref, *,
                         b_tile, shifts):
    """One batch tile per grid step.

    x_ref     : (b_tile, Cin, HW)   f32  raw images, spatial flattened, unpadded
    w_ref     : (K*K, Cout, Cin)    f32  conv weight, one (Cout, Cin) slab per tap
    cmask_ref : (Cout, 1)           f32  channel mask = sum_i alphas[i]*channel_masks[i]
    vmask_ref : (K*K, 1, HW)        f32  per-tap spatial validity ('same' zero padding)
    o_ref     : (b_tile, Cout, HW)  f32
    """
    cout = o_ref.shape[1]
    hw = o_ref.shape[2]
    # Hoisted once per grid step (JAX does not CSE broadcast_in_dim in loops).
    cmask = jnp.broadcast_to(cmask_ref[...], (cout, hw))

    def one_image(b, carry):
        x = x_ref[b]                                          # (Cin, HW)
        acc = jnp.zeros((cout, hw), jnp.float32)
        for t, m in enumerate(shifts):                        # static K*K taps
            if m == 0:
                tap = x
            else:
                # Circular shift along the flattened spatial (lane) axis.
                # Elements that wrapped around / fall outside the image are
                # zeroed by vmask below, which reproduces the conv's 'same'
                # zero padding exactly.
                tap = jnp.concatenate([x[:, m:], x[:, :m]], axis=-1)
            tap = tap * vmask_ref[t]                          # (Cin,HW)*(1,HW)
            acc = acc + jnp.dot(w_ref[t], tap,
                                preferred_element_type=jnp.float32)
        # ReLU, then channel mask (mask applied after ReLU: exact for any alphas).
        o_ref[b] = (jnp.maximum(acc, 0.0) * cmask).astype(o_ref.dtype)
        return carry

    jax.lax.fori_loop(0, b_tile, one_image, 0, unroll=True)


def variable_conv(x_nchw, weight_oihw, alphas, channel_masks, window_size):
    """Pallas implementation of VariableConv.forward.  x_nchw: (N, Cin, H, W)."""
    N, Cin, H, W = x_nchw.shape
    Cout = weight_oihw.shape[0]
    K = int(window_size)
    KK = K * K
    pad_lo = (K - 1) // 2               # PyTorch / XLA 'same' split for stride 1
    HW = H * W

    # ---- tiny wrapper-side tensors (no activation-sized copies) -----------
    x = x_nchw.astype(jnp.float32).reshape(N, Cin, HW)     # metadata-only reshape
    w_taps = (jnp.transpose(weight_oihw.astype(jnp.float32), (2, 3, 0, 1))
              .reshape(KK, Cout, Cin))                     # tap t = kh*K + kw
    cmask = jnp.sum(alphas.astype(jnp.float32)[:, None]
                    * channel_masks.astype(jnp.float32), axis=0).reshape(Cout, 1)

    # Per-tap circular shift + validity mask over the flattened spatial axis.
    q = jnp.arange(HW, dtype=jnp.int32)
    hh, ww = q // W, q % W
    shifts, vrows = [], []
    for kh in range(K):
        for kw in range(K):
            dh, dw = kh - pad_lo, kw - pad_lo
            shifts.append((dh * W + dw) % HW)              # static Python int
            valid = ((hh + dh >= 0) & (hh + dh < H)
                     & (ww + dw >= 0) & (ww + dw < W))
            vrows.append(valid.astype(jnp.float32))
    vmask = jnp.stack(vrows, axis=0).reshape(KK, 1, HW)

    # ---- VMEM-aware batch tiling -------------------------------------------
    try:
        vmem_cap = int(pltpu.get_tpu_info().vmem_capacity_bytes)
    except Exception:
        vmem_cap = 64 * 1024 * 1024     # v7x has the smallest VMEM (64 MiB)

    itemsize = 4                        # everything stays f32
    per_img = 2 * (Cin * HW + Cout * HW) * itemsize           # dbl-buffered in+out
    fixed = (2 * (KK * Cout * Cin + KK * HW + Cout) * itemsize  # resident operands
             + 4 * max(Cin, Cout) * HW * itemsize)              # acc/tap temporaries
    budget = vmem_cap // 2
    b_fit = max(1, (budget - fixed) // per_img)

    # >=2 grid steps for N>=2 (both v7x TensorCores busy), >=4 once N allows.
    step_cap = max(1, N // 4) if N >= 2 else 1
    b_cap = max(1, min(b_fit, 16, step_cap))
    # Prefer a divisor of N (no batch padding) unless it is much smaller.
    div = max(d for d in range(1, b_cap + 1) if N % d == 0)
    b_tile = div if 2 * div > b_cap else b_cap
    n_pad = _round_up(N, b_tile)
    if n_pad != N:
        x = jnp.pad(x, ((0, n_pad - N), (0, 0), (0, 0)))

    need = b_tile * per_img + fixed
    vmem_limit = int(min(max(need + (8 << 20), 32 << 20), vmem_cap * 3 // 4))

    grid = (n_pad // b_tile,)

    out = pl.pallas_call(
        functools.partial(variable_conv_kernel,
                          b_tile=b_tile, shifts=tuple(shifts)),
        out_shape=jax.ShapeDtypeStruct((n_pad, Cout, HW), jnp.float32),
        grid=grid,
        in_specs=[
            pl.BlockSpec((b_tile, Cin, HW), lambda b: (b, 0, 0)),
            pl.BlockSpec((KK, Cout, Cin), lambda b: (0, 0, 0)),
            pl.BlockSpec((Cout, 1), lambda b: (0, 0)),
            pl.BlockSpec((KK, 1, HW), lambda b: (0, 0, 0)),
        ],
        out_specs=pl.BlockSpec((b_tile, Cout, HW), lambda b: (b, 0, 0)),
        compiler_params=pltpu.CompilerParams(
            dimension_semantics=("parallel",),
            vmem_limit_bytes=vmem_limit,
        ),
    )(x, w_taps, cmask, vmask)

    # (n_pad, Cout, H*W) -> (N, Cout, H, W): slice + metadata-only reshape.
    return out[:N].reshape(N, Cout, H, W)


def build_channel_masks(out_channels, channel_scale_factor):
    num_masks = int(out_channels / channel_scale_factor)
    rows = []
    for i in range(num_masks):
        n_ones = int(channel_scale_factor * (i + 1))
        rows.append([1.0 if j < n_ones else 0.0 for j in range(out_channels)])
    return jnp.array(rows, dtype=jnp.float32)                 # (num_masks, Cout)


def reference_forward(x_nchw, weight_oihw, alphas, channel_masks):
    conv = jax.lax.conv_general_dilated(
        x_nchw.astype(jnp.float32), weight_oihw.astype(jnp.float32),
        window_strides=(1, 1), padding="SAME",
        dimension_numbers=("NCHW", "OIHW", "NCHW"))
    out = jnp.maximum(conv, 0.0)
    masks = jnp.sum(alphas[None, :] * channel_masks.T, axis=1)  # (Cout,)
    return masks.reshape(1, -1, 1, 1) * out


if __name__ == "__main__":
    # Small shapes consistent with the module.
    N, Cin, H, W = 2, 4, 16, 16
    Cout, K, scale = 8, 3, 2

    key = jax.random.PRNGKey(0)
    kx, kw, ka = jax.random.split(key, 3)

    x = jax.random.normal(kx, (N, Cin, H, W), dtype=jnp.float32)
    # Deterministic conv weight (OIHW), no bias (bias=False in the module).
    weight = jax.random.normal(kw, (Cout, Cin, K, K), dtype=jnp.float32) * 0.1
    channel_masks = build_channel_masks(Cout, scale)          # (4, 8)
    alphas = jax.nn.softmax(jax.random.normal(ka, (channel_masks.shape[0],)))

    y = variable_conv(x, weight, alphas, channel_masks, K)
    y = jax.block_until_ready(y)

    y_ref = reference_forward(x, weight, alphas, channel_masks)
    assert y.shape == (N, Cout, H, W)
    # f32 end to end; tolerance only covers MXU matmul pass accumulation order.
    assert jnp.allclose(y, y_ref, atol=2e-2, rtol=2e-2), "mismatch vs reference"

    print("KERNEL_OK")
</pallas_src>

<mosaic_0001>
module attributes {stable_mosaic.version = 11 : i64} {
  func.func @variable_conv_kernel(%arg0: i32, %arg1: memref<1x4x256xf32, #tpu.memory_space<vmem>>, %arg2: memref<9x8x4xf32, #tpu.memory_space<vmem>>, %arg3: memref<8x1xf32, #tpu.memory_space<vmem>>, %arg4: memref<9x1x256xf32, #tpu.memory_space<vmem>>, %arg5: memref<1x8x256xf32, #tpu.memory_space<vmem>>) attributes {dimension_semantics = [#tpu.dimension_semantics<parallel>], iteration_bounds = array<i64: 2>, scalar_prefetch = 0 : i64, scratch_operands = 0 : i64, tpu.core_type = #tpu.core_type<tc>, window_params = [{transform_indices = @transform_0, window_bounds = array<i64: 1, 4, 256>}, {pipeline_mode = #tpu.pipeline_mode<synchronous>, transform_indices = @transform_1, window_bounds = array<i64: 9, 8, 4>}, {pipeline_mode = #tpu.pipeline_mode<synchronous>, transform_indices = @transform_2, window_bounds = array<i64: 8, 1>}, {pipeline_mode = #tpu.pipeline_mode<synchronous>, transform_indices = @transform_3, window_bounds = array<i64: 9, 1, 256>}, {transform_indices = @transform_4, window_bounds = array<i64: 1, 8, 256>}]} {
    %c0 = arith.constant 0 : index
    %c0_0 = arith.constant 0 : index
    %0 = vector.load %arg3[%c0, %c0_0] : memref<8x1xf32, #tpu.memory_space<vmem>>, vector<8x1xf32>
    %1 = vector.shape_cast %0 : vector<8x1xf32> to vector<8x1xf32>
    %2 = vector.broadcast %1 : vector<8x1xf32> to vector<8x256xf32>
    %c0_i32 = arith.constant 0 : i32
    %3 = arith.index_cast %c0_i32 : i32 to index
    %c0_1 = arith.constant 0 : index
    %c0_2 = arith.constant 0 : index
    %4 = vector.load %arg1[%3, %c0_1, %c0_2] : memref<1x4x256xf32, #tpu.memory_space<vmem>>, vector<1x4x256xf32>
    %5 = vector.shape_cast %4 : vector<1x4x256xf32> to vector<4x256xf32>
    %cst = arith.constant 0.000000e+00 : f32
    %6 = vector.broadcast %cst : f32 to vector<8x256xf32>
    %7 = vector.extract_strided_slice %5 {offsets = [0, 239], sizes = [4, 17], strides = [1, 1]} : vector<4x256xf32> to vector<4x17xf32>
    %8 = vector.extract_strided_slice %5 {offsets = [0, 0], sizes = [4, 239], strides = [1, 1]} : vector<4x256xf32> to vector<4x239xf32>
    %9 = tpu.concatenate %7, %8 in 1 : vector<4x17xf32>, vector<4x239xf32> -> vector<4x256xf32>
    %c0_3 = arith.constant 0 : index
    %c0_4 = arith.constant 0 : index
    %c0_5 = arith.constant 0 : index
    %10 = vector.load %arg4[%c0_3, %c0_4, %c0_5] : memref<9x1x256xf32, #tpu.memory_space<vmem>>, vector<1x1x256xf32>
    %11 = vector.shape_cast %10 : vector<1x1x256xf32> to vector<1x256xf32>
    %12 = vector.broadcast %11 : vector<1x256xf32> to vector<4x256xf32>
    %13 = arith.mulf %9, %12 : vector<4x256xf32>
    %c0_6 = arith.constant 0 : index
    %c0_7 = arith.constant 0 : index
    %c0_8 = arith.constant 0 : index
    %14 = vector.load %arg2[%c0_6, %c0_7, %c0_8] : memref<9x8x4xf32, #tpu.memory_space<vmem>>, vector<1x8x4xf32>
    %15 = vector.shape_cast %14 : vector<1x8x4xf32> to vector<8x4xf32>
    %cst_9 = arith.constant dense<0.000000e+00> : vector<8x256xf32>
    %16 = tpu.matmul %15, %13, %cst_9 {dimension_numbers = #tpu.dot_dimension_numbers<[1], [0], [0], [1], [0, 0, 1, 1], [], []>} : vector<8x4xf32>, vector<4x256xf32>, vector<8x256xf32> -> vector<8x256xf32>
    %17 = arith.addf %6, %16 : vector<8x256xf32>
    %18 = vector.extract_strided_slice %5 {offsets = [0, 240], sizes = [4, 16], strides = [1, 1]} : vector<4x256xf32> to vector<4x16xf32>
    %19 = vector.extract_strided_slice %5 {offsets = [0, 0], sizes = [4, 240], strides = [1, 1]} : vector<4x256xf32> to vector<4x240xf32>
    %20 = tpu.concatenate %18, %19 in 1 : vector<4x16xf32>, vector<4x240xf32> -> vector<4x256xf32>
    %c1 = arith.constant 1 : index
    %c0_10 = arith.constant 0 : index
    %c0_11 = arith.constant 0 : index
    %21 = vector.load %arg4[%c1, %c0_10, %c0_11] : memref<9x1x256xf32, #tpu.memory_space<vmem>>, vector<1x1x256xf32>
    %22 = vector.shape_cast %21 : vector<1x1x256xf32> to vector<1x256xf32>
    %23 = vector.broadcast %22 : vector<1x256xf32> to vector<4x256xf32>
    %24 = arith.mulf %20, %23 : vector<4x256xf32>
    %c1_12 = arith.constant 1 : index
    %c0_13 = arith.constant 0 : index
    %c0_14 = arith.constant 0 : index
    %25 = vector.load %arg2[%c1_12, %c0_13, %c0_14] : memref<9x8x4xf32, #tpu.memory_space<vmem>>, vector<1x8x4xf32>
    %26 = vector.shape_cast %25 : vector<1x8x4xf32> to vector<8x4xf32>
    %cst_15 = arith.constant dense<0.000000e+00> : vector<8x256xf32>
    %27 = tpu.matmul %26, %24, %cst_15 {dimension_numbers = #tpu.dot_dimension_numbers<[1], [0], [0], [1], [0, 0, 1, 1], [], []>} : vector<8x4xf32>, vector<4x256xf32>, vector<8x256xf32> -> vector<8x256xf32>
    %28 = arith.addf %17, %27 : vector<8x256xf32>
    %29 = vector.extract_strided_slice %5 {offsets = [0, 241], sizes = [4, 15], strides = [1, 1]} : vector<4x256xf32> to vector<4x15xf32>
    %30 = vector.extract_strided_slice %5 {offsets = [0, 0], sizes = [4, 241], strides = [1, 1]} : vector<4x256xf32> to vector<4x241xf32>
    %31 = tpu.concatenate %29, %30 in 1 : vector<4x15xf32>, vector<4x241xf32> -> vector<4x256xf32>
    %c2 = arith.constant 2 : index
    %c0_16 = arith.constant 0 : index
    %c0_17 = arith.constant 0 : index
    %32 = vector.load %arg4[%c2, %c0_16, %c0_17] : memref<9x1x256xf32, #tpu.memory_space<vmem>>, vector<1x1x256xf32>
    %33 = vector.shape_cast %32 : vector<1x1x256xf32> to vector<1x256xf32>
    %34 = vector.broadcast %33 : vector<1x256xf32> to vector<4x256xf32>
    %35 = arith.mulf %31, %34 : vector<4x256xf32>
    %c2_18 = arith.constant 2 : index
    %c0_19 = arith.constant 0 : index
    %c0_20 = arith.constant 0 : index
    %36 = vector.load %arg2[%c2_18, %c0_19, %c0_20] : memref<9x8x4xf32, #tpu.memory_space<vmem>>, vector<1x8x4xf32>
    %37 = vector.shape_cast %36 : vector<1x8x4xf32> to vector<8x4xf32>
    %cst_21 = arith.constant dense<0.000000e+00> : vector<8x256xf32>
    %38 = tpu.matmul %37, %35, %cst_21 {dimension_numbers = #tpu.dot_dimension_numbers<[1], [0], [0], [1], [0, 0, 1, 1], [], []>} : vector<8x4xf32>, vector<4x256xf32>, vector<8x256xf32> -> vector<8x256xf32>
    %39 = arith.addf %28, %38 : vector<8x256xf32>
    %40 = vector.extract_strided_slice %5 {offsets = [0, 255], sizes = [4, 1], strides = [1, 1]} : vector<4x256xf32> to vector<4x1xf32>
    %41 = vector.extract_strided_slice %5 {offsets = [0, 0], sizes = [4, 255], strides = [1, 1]} : vector<4x256xf32> to vector<4x255xf32>
    %42 = tpu.concatenate %40, %41 in 1 : vector<4x1xf32>, vector<4x255xf32> -> vector<4x256xf32>
    %c3 = arith.constant 3 : index
    %c0_22 = arith.constant 0 : index
    %c0_23 = arith.constant 0 : index
    %43 = vector.load %arg4[%c3, %c0_22, %c0_23] : memref<9x1x256xf32, #tpu.memory_space<vmem>>, vector<1x1x256xf32>
    %44 = vector.shape_cast %43 : vector<1x1x256xf32> to vector<1x256xf32>
    %45 = vector.broadcast %44 : vector<1x256xf32> to vector<4x256xf32>
    %46 = arith.mulf %42, %45 : vector<4x256xf32>
    %c3_24 = arith.constant 3 : index
    %c0_25 = arith.constant 0 : index
    %c0_26 = arith.constant 0 : index
    %47 = vector.load %arg2[%c3_24, %c0_25, %c0_26] : memref<9x8x4xf32, #tpu.memory_space<vmem>>, vector<1x8x4xf32>
    %48 = vector.shape_cast %47 : vector<1x8x4xf32> to vector<8x4xf32>
    %cst_27 = arith.constant dense<0.000000e+00> : vector<8x256xf32>
    %49 = tpu.matmul %48, %46, %cst_27 {dimension_numbers = #tpu.dot_dimension_numbers<[1], [0], [0], [1], [0, 0, 1, 1], [], []>} : vector<8x4xf32>, vector<4x256xf32>, vector<8x256xf32> -> vector<8x256xf32>
    %50 = arith.addf %39, %49 : vector<8x256xf32>
    %c4 = arith.constant 4 : index
    %c0_28 = arith.constant 0 : index
    %c0_29 = arith.constant 0 : index
    %51 = vector.load %arg4[%c4, %c0_28, %c0_29] : memref<9x1x256xf32, #tpu.memory_space<vmem>>, vector<1x1x256xf32>
    %52 = vector.shape_cast %51 : vector<1x1x256xf32> to vector<1x256xf32>
    %53 = vector.broadcast %52 : vector<1x256xf32> to vector<4x256xf32>
    %54 = arith.mulf %5, %53 : vector<4x256xf32>
    %c4_30 = arith.constant 4 : index
    %c0_31 = arith.constant 0 : index
    %c0_32 = arith.constant 0 : index
    %55 = vector.load %arg2[%c4_30, %c0_31, %c0_32] : memref<9x8x4xf32, #tpu.memory_space<vmem>>, vector<1x8x4xf32>
    %56 = vector.shape_cast %55 : vector<1x8x4xf32> to vector<8x4xf32>
    %cst_33 = arith.constant dense<0.000000e+00> : vector<8x256xf32>
    %57 = tpu.matmul %56, %54, %cst_33 {dimension_numbers = #tpu.dot_dimension_numbers<[1], [0], [0], [1], [0, 0, 1, 1], [], []>} : vector<8x4xf32>, vector<4x256xf32>, vector<8x256xf32> -> vector<8x256xf32>
    %58 = arith.addf %50, %57 : vector<8x256xf32>
    %59 = vector.extract_strided_slice %5 {offsets = [0, 1], sizes = [4, 255], strides = [1, 1]} : vector<4x256xf32> to vector<4x255xf32>
    %60 = vector.extract_strided_slice %5 {offsets = [0, 0], sizes = [4, 1], strides = [1, 1]} : vector<4x256xf32> to vector<4x1xf32>
    %61 = tpu.concatenate %59, %60 in 1 : vector<4x255xf32>, vector<4x1xf32> -> vector<4x256xf32>
    %c5 = arith.constant 5 : index
    %c0_34 = arith.constant 0 : index
    %c0_35 = arith.constant 0 : index
    %62 = vector.load %arg4[%c5, %c0_34, %c0_35] : memref<9x1x256xf32, #tpu.memory_space<vmem>>, vector<1x1x256xf32>
    %63 = vector.shape_cast %62 : vector<1x1x256xf32> to vector<1x256xf32>
    %64 = vector.broadcast %63 : vector<1x256xf32> to vector<4x256xf32>
    %65 = arith.mulf %61, %64 : vector<4x256xf32>
    %c5_36 = arith.constant 5 : index
    %c0_37 = arith.constant 0 : index
    %c0_38 = arith.constant 0 : index
    %66 = vector.load %arg2[%c5_36, %c0_37, %c0_38] : memref<9x8x4xf32, #tpu.memory_space<vmem>>, vector<1x8x4xf32>
    %67 = vector.shape_cast %66 : vector<1x8x4xf32> to vector<8x4xf32>
    %cst_39 = arith.constant dense<0.000000e+00> : vector<8x256xf32>
    %68 = tpu.matmul %67, %65, %cst_39 {dimension_numbers = #tpu.dot_dimension_numbers<[1], [0], [0], [1], [0, 0, 1, 1], [], []>} : vector<8x4xf32>, vector<4x256xf32>, vector<8x256xf32> -> vector<8x256xf32>
    %69 = arith.addf %58, %68 : vector<8x256xf32>
    %70 = vector.extract_strided_slice %5 {offsets = [0, 15], sizes = [4, 241], strides = [1, 1]} : vector<4x256xf32> to vector<4x241xf32>
    %71 = vector.extract_strided_slice %5 {offsets = [0, 0], sizes = [4, 15], strides = [1, 1]} : vector<4x256xf32> to vector<4x15xf32>
    %72 = tpu.concatenate %70, %71 in 1 : vector<4x241xf32>, vector<4x15xf32> -> vector<4x256xf32>
    %c6 = arith.constant 6 : index
    %c0_40 = arith.constant 0 : index
    %c0_41 = arith.constant 0 : index
    %73 = vector.load %arg4[%c6, %c0_40, %c0_41] : memref<9x1x256xf32, #tpu.memory_space<vmem>>, vector<1x1x256xf32>
    %74 = vector.shape_cast %73 : vector<1x1x256xf32> to vector<1x256xf32>
    %75 = vector.broadcast %74 : vector<1x256xf32> to vector<4x256xf32>
    %76 = arith.mulf %72, %75 : vector<4x256xf32>
    %c6_42 = arith.constant 6 : index
    %c0_43 = arith.constant 0 : index
    %c0_44 = arith.constant 0 : index
    %77 = vector.load %arg2[%c6_42, %c0_43, %c0_44] : memref<9x8x4xf32, #tpu.memory_space<vmem>>, vector<1x8x4xf32>
    %78 = vector.shape_cast %77 : vector<1x8x4xf32> to vector<8x4xf32>
    %cst_45 = arith.constant dense<0.000000e+00> : vector<8x256xf32>
    %79 = tpu.matmul %78, %76, %cst_45 {dimension_numbers = #tpu.dot_dimension_numbers<[1], [0], [0], [1], [0, 0, 1, 1], [], []>} : vector<8x4xf32>, vector<4x256xf32>, vector<8x256xf32> -> vector<8x256xf32>
    %80 = arith.addf %69, %79 : vector<8x256xf32>
    %81 = vector.extract_strided_slice %5 {offsets = [0, 16], sizes = [4, 240], strides = [1, 1]} : vector<4x256xf32> to vector<4x240xf32>
    %82 = vector.extract_strided_slice %5 {offsets = [0, 0], sizes = [4, 16], strides = [1, 1]} : vector<4x256xf32> to vector<4x16xf32>
    %83 = tpu.concatenate %81, %82 in 1 : vector<4x240xf32>, vector<4x16xf32> -> vector<4x256xf32>
    %c7 = arith.constant 7 : index
    %c0_46 = arith.constant 0 : index
    %c0_47 = arith.constant 0 : index
    %84 = vector.load %arg4[%c7, %c0_46, %c0_47] : memref<9x1x256xf32, #tpu.memory_space<vmem>>, vector<1x1x256xf32>
    %85 = vector.shape_cast %84 : vector<1x1x256xf32> to vector<1x256xf32>
    %86 = vector.broadcast %85 : vector<1x256xf32> to vector<4x256xf32>
    %87 = arith.mulf %83, %86 : vector<4x256xf32>
    %c7_48 = arith.constant 7 : index
    %c0_49 = arith.constant 0 : index
    %c0_50 = arith.constant 0 : index
    %88 = vector.load %arg2[%c7_48, %c0_49, %c0_50] : memref<9x8x4xf32, #tpu.memory_space<vmem>>, vector<1x8x4xf32>
    %89 = vector.shape_cast %88 : vector<1x8x4xf32> to vector<8x4xf32>
    %cst_51 = arith.constant dense<0.000000e+00> : vector<8x256xf32>
    %90 = tpu.matmul %89, %87, %cst_51 {dimension_numbers = #tpu.dot_dimension_numbers<[1], [0], [0], [1], [0, 0, 1, 1], [], []>} : vector<8x4xf32>, vector<4x256xf32>, vector<8x256xf32> -> vector<8x256xf32>
    %91 = arith.addf %80, %90 : vector<8x256xf32>
    %92 = vector.extract_strided_slice %5 {offsets = [0, 17], sizes = [4, 239], strides = [1, 1]} : vector<4x256xf32> to vector<4x239xf32>
    %93 = vector.extract_strided_slice %5 {offsets = [0, 0], sizes = [4, 17], strides = [1, 1]} : vector<4x256xf32> to vector<4x17xf32>
    %94 = tpu.concatenate %92, %93 in 1 : vector<4x239xf32>, vector<4x17xf32> -> vector<4x256xf32>
    %c8 = arith.constant 8 : index
    %c0_52 = arith.constant 0 : index
    %c0_53 = arith.constant 0 : index
    %95 = vector.load %arg4[%c8, %c0_52, %c0_53] : memref<9x1x256xf32, #tpu.memory_space<vmem>>, vector<1x1x256xf32>
    %96 = vector.shape_cast %95 : vector<1x1x256xf32> to vector<1x256xf32>
    %97 = vector.broadcast %96 : vector<1x256xf32> to vector<4x256xf32>
    %98 = arith.mulf %94, %97 : vector<4x256xf32>
    %c8_54 = arith.constant 8 : index
    %c0_55 = arith.constant 0 : index
    %c0_56 = arith.constant 0 : index
    %99 = vector.load %arg2[%c8_54, %c0_55, %c0_56] : memref<9x8x4xf32, #tpu.memory_space<vmem>>, vector<1x8x4xf32>
    %100 = vector.shape_cast %99 : vector<1x8x4xf32> to vector<8x4xf32>
    %cst_57 = arith.constant dense<0.000000e+00> : vector<8x256xf32>
    %101 = tpu.matmul %100, %98, %cst_57 {dimension_numbers = #tpu.dot_dimension_numbers<[1], [0], [0], [1], [0, 0, 1, 1], [], []>} : vector<8x4xf32>, vector<4x256xf32>, vector<8x256xf32> -> vector<8x256xf32>
    %102 = arith.addf %91, %101 : vector<8x256xf32>
    %cst_58 = arith.constant 0.000000e+00 : f32
    %103 = vector.broadcast %cst_58 : f32 to vector<8x256xf32>
    %104 = arith.maximumf %102, %103 : vector<8x256xf32>
    %105 = arith.mulf %104, %2 : vector<8x256xf32>
    %106 = arith.index_cast %c0_i32 : i32 to index
    %c0_59 = arith.constant 0 : index
    %c0_60 = arith.constant 0 : index
    %107 = vector.load %arg5[%106, %c0_59, %c0_60] : memref<1x8x256xf32, #tpu.memory_space<vmem>>, vector<1x8x256xf32>
    %108 = vector.shape_cast %107 : vector<1x8x256xf32> to vector<8x256xf32>
    %109 = vector.shape_cast %105 : vector<8x256xf32> to vector<1x8x256xf32>
    tpu.vector_store %arg5[%106, %c0_59, %c0_60], %109 {strides = array<i32>} : memref<1x8x256xf32, #tpu.memory_space<vmem>>, vector<1x8x256xf32>,
    %c1_i32 = arith.constant 1 : i32
    return
  }
  func.func @transform_0(%arg0: i32) -> (i32, i32, i32) {
    %c0_i32 = arith.constant 0 : i32
    %c0_i32_0 = arith.constant 0 : i32
    %c0_i32_1 = arith.constant 0 : i32
    return %arg0, %c0_i32, %c0_i32_0 : i32, i32, i32
  }
  func.func @transform_1(%arg0: i32) -> (i32, i32, i32) {
    %c0_i32 = arith.constant 0 : i32
    %c0_i32_0 = arith.constant 0 : i32
    %c0_i32_1 = arith.constant 0 : i32
    %c0_i32_2 = arith.constant 0 : i32
    return %c0_i32, %c0_i32_0, %c0_i32_1 : i32, i32, i32
  }
  func.func @transform_2(%arg0: i32) -> (i32, i32) {
    %c0_i32 = arith.constant 0 : i32
    %c0_i32_0 = arith.constant 0 : i32
    %c0_i32_1 = arith.constant 0 : i32
    return %c0_i32, %c0_i32_0 : i32, i32
  }
  func.func @transform_3(%arg0: i32) -> (i32, i32, i32) {
    %c0_i32 = arith.constant 0 : i32
    %c0_i32_0 = arith.constant 0 : i32
    %c0_i32_1 = arith.constant 0 : i32
    %c0_i32_2 = arith.constant 0 : i32
    return %c0_i32, %c0_i32_0, %c0_i32_1 : i32, i32, i32
  }
  func.func @transform_4(%arg0: i32) -> (i32, i32, i32) {
    %c0_i32 = arith.constant 0 : i32
    %c0_i32_0 = arith.constant 0 : i32
    %c0_i32_1 = arith.constant 0 : i32
    return %arg0, %c0_i32, %c0_i32_0 : i32, i32, i32
  }
}

</mosaic_0001>

<llo_original>
// kernel: tpu_custom_call.1
$region0: #{tpu_custom_call.1}
  #allocation0 [shape = 'u32[]', space=smem, size = 0x4, offset = 0x4, fixed_abs, tag = 'smem constant byte address 0x4 - core index']
  #allocation1 [shape = 'u32[144,128]{1,0:T(1,128)}', space=vmem, size = 0x12000, scoped, tag = 'internal scratch']
  %s0 = inlined_call_operand.vmem [shape: f32[2,4,256], index: 0, kind: input, shape index: {}]
  %s1 = inlined_call_operand.vmem [shape: f32[9,8,4], index: 1, kind: input, shape index: {}]
  %s2 = inlined_call_operand.vmem [shape: f32[8,1], index: 2, kind: input, shape index: {}]
  %s3 = inlined_call_operand.vmem [shape: f32[9,1,256], index: 3, kind: input, shape index: {}]
  %s4 = inlined_call_operand.hbm [shape: f32[2,8,256], index: 4, kind: output, shape index: {}]
  %s5 = sld [smem:[#allocation0]]
  $region49: #{tpu_custom_call.1} parent=0
    _
  %s7 = ssub.s32 1, %s5
  %s8 = scalar_select 0, %s7, %s5
  $region1: #{tpu_custom_call.1} parent=0
    #allocation2 [shape = 'u8[16384]{0}', space=vmem, size = 0x4000, scoped, tag = 'output window, operand 0']
    #allocation3 [shape = 's32[2]{0}', space=sflag, size = 0x8, scoped, tag = 'scoped memory for tpu_custom_call.1']
    %9 = vsyncpa [#allocation3], 0
    %s10 = scalar_lea.sflag [#allocation3], 1
    %11 = vsyncpa %s10, 0
    loop: start=0, step=1, limit=4
    $region2: #{tpu_custom_call.1} parent=1 // loop_pre_header
      _
    $region3: #{tpu_custom_call.1} parent=1 // loop_header
      %s13 = sphi 0, %s17
      %p14 = scmp.ge.s32.totalorder %s13, 4
      %s23 = sphi 0, %s25
      %s26 = sphi 0, %s23
      %s27 = sphi 0, %s26
      %s43 = sphi 0, %s27
      %s47 = sphi 0, %s47
      %s49 = sphi 0, %s47
      %s50 = sphi 0, %s49
      %s64 = sphi 0, %s50
      %s68 = sphi 0, %s68
      %s70 = sphi 0, %s68
      %s71 = sphi 0, %s70
      %s85 = sphi 0, %s71
      %s89 = sphi 0, %s89
      %s91 = sphi 0, %s89
      %s92 = sphi 0, %s91
      %s106 = sphi 0, %s92
      %s112 = sphi 0, %s114
      %s115 = sphi 0, %s112
      %s116 = sphi 0, %s115
      %s132 = sphi 0, %s116
    $region4: #{tpu_custom_call.1} parent=1 // loop_header_branch
      %16 = sbr.rel (%p14) target = $region8
    $region5: #{tpu_custom_call.1} parent=1 // loop_body
      %s18 = ssub.s32 %s13, 1
      %s19 = ssub.s32 %s13, 2
      %s20 = sadd.s32 %s13, 1
      %s21 = ssub.s32 %s13, %s20
      %p22 = scmp.eq.s32.totalorder %s21, 0
      %s24 = sadd.s32 %s23, 1
      %s25 = scalar_select %p22, %s23, %s24
      %p28 = pneg %p22
      %p29 = scmp.eq.s32.totalorder %s13, 1
      %p30 = por %p28, %p29
      %p31 = scmp.ne.s32.totalorder %s23, %s26
      %p32 = scmp.eq.s32.totalorder %s13, 0
      %p33 = por %p31, %p32
      %p34 = scmp.ne.s32.totalorder %s23, %s26
      %p35 = scmp.eq.s32.totalorder %s18, 1
      %p36 = por %p34, %p35
      %p37 = scmp.ne.s32.totalorder %s26, %s27
      %p38 = scmp.eq.s32.totalorder %s18, 0
      %p39 = por %p37, %p38
      %p40 = scmp.ne.s32.totalorder %s26, %s27
      %p41 = scmp.eq.s32.totalorder %s19, 1
      %p42 = por %p40, %p41
      %p44 = scmp.ne.s32.totalorder %s27, %s43
      %p45 = scmp.eq.s32.totalorder %s19, 0
      %p46 = por %p44, %p45
      %s48 = sadd.s32 %s47, 1
      %p51 = scmp.eq.s32.totalorder %s13, 1
      %p52 = scmp.ne.s32.totalorder %s47, %s49
      %p53 = scmp.eq.s32.totalorder %s13, 0
      %p54 = por %p52, %p53
      %p55 = scmp.ne.s32.totalorder %s47, %s49
      %p56 = scmp.eq.s32.totalorder %s18, 1
      %p57 = por %p55, %p56
      %p58 = scmp.ne.s32.totalorder %s49, %s50
      %p59 = scmp.eq.s32.totalorder %s18, 0
      %p60 = por %p58, %p59
      %p61 = scmp.ne.s32.totalorder %s49, %s50
      %p62 = scmp.eq.s32.totalorder %s19, 1
      %p63 = por %p61, %p62
      %p65 = scmp.ne.s32.totalorder %s50, %s64
      %p66 = scmp.eq.s32.totalorder %s19, 0
      %p67 = por %p65, %p66
      %s69 = sadd.s32 %s68, 1
      %p72 = scmp.eq.s32.totalorder %s13, 1
      %p73 = scmp.ne.s32.totalorder %s68, %s70
      %p74 = scmp.eq.s32.totalorder %s13, 0
      %p75 = por %p73, %p74
      %p76 = scmp.ne.s32.totalorder %s68, %s70
      %p77 = scmp.eq.s32.totalorder %s18, 1
      %p78 = por %p76, %p77
      %p79 = scmp.ne.s32.totalorder %s70, %s71
      %p80 = scmp.eq.s32.totalorder %s18, 0
      %p81 = por %p79, %p80
      %p82 = scmp.ne.s32.totalorder %s70, %s71
      %p83 = scmp.eq.s32.totalorder %s19, 1
      %p84 = por %p82, %p83
      %p86 = scmp.ne.s32.totalorder %s71, %s85
      %p87 = scmp.eq.s32.totalorder %s19, 0
      %p88 = por %p86, %p87
      %s90 = sadd.s32 %s89, 1
      %p93 = scmp.eq.s32.totalorder %s13, 1
      %p94 = scmp.ne.s32.totalorder %s89, %s91
      %p95 = scmp.eq.s32.totalorder %s13, 0
      %p96 = por %p94, %p95
      %p97 = scmp.ne.s32.totalorder %s89, %s91
      %p98 = scmp.eq.s32.totalorder %s18, 1
      %p99 = por %p97, %p98
      %p100 = scmp.ne.s32.totalorder %s91, %s92
      %p101 = scmp.eq.s32.totalorder %s18, 0
      %p102 = por %p100, %p101
      %p103 = scmp.ne.s32.totalorder %s91, %s92
      %p104 = scmp.eq.s32.totalorder %s19, 1
      %p105 = por %p103, %p104
      %p107 = scmp.ne.s32.totalorder %s92, %s106
      %p108 = scmp.eq.s32.totalorder %s19, 0
      %p109 = por %p107, %p108
      %s110 = ssub.s32 %s13, %s20
      %p111 = scmp.eq.s32.totalorder %s110, 0
      %s113 = sadd.s32 %s112, 1
      %s114 = scalar_select %p111, %s112, %s113
      %p117 = pneg %p111
      %p118 = scmp.eq.s32.totalorder %s13, 1
      %p119 = por %p117, %p118
      %p120 = scmp.ne.s32.totalorder %s112, %s115
      %p121 = scmp.eq.s32.totalorder %s13, 0
      %p122 = por %p120, %p121
      %p123 = scmp.ne.s32.totalorder %s112, %s115
      %p124 = scmp.eq.s32.totalorder %s18, 1
      %p125 = por %p123, %p124
      %p126 = scmp.ne.s32.totalorder %s115, %s116
      %p127 = scmp.eq.s32.totalorder %s18, 0
      %p128 = por %p126, %p127
      %p129 = scmp.ne.s32.totalorder %s115, %s116
      %p130 = scmp.eq.s32.totalorder %s19, 1
      %p131 = por %p129, %p130
      %p133 = scmp.ne.s32.totalorder %s116, %s132
      %p134 = scmp.eq.s32.totalorder %s19, 0
      %p135 = por %p133, %p134
      %p136 = scmp.le.s32.totalorder 1, %s13
      %p137 = scmp.lt.s32.totalorder %s13, 3
      %p138 = pnand %p136, %p137
      %p139 = pneg %p138
      // Predicated region
      $region9: #{tpu_custom_call.1} parent=5 // pred_check
        _
      $region10: #{tpu_custom_call.1} parent=5 // pred_check_branch
        %141 = sbr.rel (%p138) target = $region12
      $region11: #{tpu_custom_call.1} parent=5 // pred_region
        %s142 = ssub.s32 %s13, 1
        // Predicated region
        $region13: #{tpu_custom_call.1} parent=11 // pred_check
          %p143 = pneg %p60
        $region14: #{tpu_custom_call.1} parent=11 // pred_check_branch
          %145 = sbr.rel (%p143) target = $region16
        $region15: #{tpu_custom_call.1} parent=11 // pred_region
          _
        $region16: #{tpu_custom_call.1} parent=11 // pred_fallthru
          _
        // Predicated region
        $region17: #{tpu_custom_call.1} parent=11 // pred_check
          %p146 = pneg %p81
        $region18: #{tpu_custom_call.1} parent=11 // pred_check_branch
          %148 = sbr.rel (%p146) target = $region20
        $region19: #{tpu_custom_call.1} parent=11 // pred_region
          _
        $region20: #{tpu_custom_call.1} parent=11 // pred_fallthru
          _
        // Predicated region
        $region21: #{tpu_custom_call.1} parent=11 // pred_check
          %p149 = pneg %p102
        $region22: #{tpu_custom_call.1} parent=11 // pred_check_branch
          %151 = sbr.rel (%p149) target = $region24
        $region23: #{tpu_custom_call.1} parent=11 // pred_region
          _
        $region24: #{tpu_custom_call.1} parent=11 // pred_fallthru
          _
      $region12: #{tpu_custom_call.1} parent=5 // pred_fallthru
        _
      %p152 = scmp.lt.s32.totalorder %s13, 2
      // Predicated region
      $region25: #{tpu_custom_call.1} parent=5 // pred_check
        %p153 = pneg %p152
      $region26: #{tpu_custom_call.1} parent=5 // pred_check_branch
        %155 = sbr.rel (%p153) target = $region28
      $region27: #{tpu_custom_call.1} parent=5 // pred_region
        // Predicated region
        $region29: #{tpu_custom_call.1} parent=27 // pred_check
          %p156 = pneg %p33
        $region30: #{tpu_custom_call.1} parent=27 // pred_check_branch
          %158 = sbr.rel (%p156) target = $region32
        $region31: #{tpu_custom_call.1} parent=27 // pred_region
          %p159 = scmp.lt.s32.totalorder %s13, 1
          %s160 = scalar_select %p159, %s13, 1
          %s161 = smul.addr %s160, 2
          %s162 = smul.addr %s161, 4
          %s163 = scalar_lea.vmem %s0, %s162
        $region32: #{tpu_custom_call.1} parent=27 // pred_fallthru
          _
      $region28: #{tpu_custom_call.1} parent=5 // pred_fallthru
        _
      %p164 = scmp.le.s32.totalorder 1, %s13
      %p165 = scmp.lt.s32.totalorder %s13, 3
      %p166 = pnand %p164, %p165
      %p167 = pneg %p166
      // Predicated region
      $region33: #{tpu_custom_call.1} parent=5 // pred_check
        _
      $region34: #{tpu_custom_call.1} parent=5 // pred_check_branch
        %169 = sbr.rel (%p166) target = $region36
      $region35: #{tpu_custom_call.1} parent=5 // pred_region
        %s170 = ssub.s32 %s13, 1
        %p171 = scmp.lt.s32.totalorder %s18, 1
        %s172 = scalar_select %p171, %s18, 1
        %s173 = smul.addr %s172, 2
        %s174 = smul.addr %s173, 4
        %s175 = scalar_lea.vmem %s0, %s174
        %p176 = pneg %p39
        %p177 = pneg %p36
        %p178 = pneg %p60
        %p179 = pneg %p57
        %p180 = pneg %p81
        %p181 = pneg %p78
        %p182 = pneg %p102
        %p183 = pneg %p99
        %p184 = pneg %p128
        %p185 = pneg %p125
        %s186 = sand.u32 %s115, 1
        %s187 = scalar_lea.sflag [#allocation3], %s186
        %s188 = sand.u32 %s115, 1
        %s189 = smul.addr %s188, 16
        %s190 = scalar_lea.vmem [#allocation2], %s189
        %p191 = scmp.lt.s32.totalorder %s18, 1
        %s192 = scalar_select %p191, %s18, 1
        %s193 = smul.addr %s192, 2
        %s194 = smul.addr %s193, 4
        %s195 = scalar_lea.vmem %s0, %s194
        %v196 = vld [vmem:[%s2] sm:$0xff]
        %198 = vset.pattern.permute.xlu0 0
        %199 = vperm.xlu0 %198, %v196
        %v200 = vpop.permute.xlu0 %199
        %v202 = vld [vmem:[%s195] sm:$0xff]
        %v204 = vcombine.high %v202, %v202
        %205 = vrot.lane.b32.xlu0 %v204, 17
        %v206 = vpop.permute.xlu0 %205
        %208 = vrot.lane.b32.xlu0 %v202, 17
        %v209 = vpop.permute.xlu0 %208
        %vm210 = vcmask 138240
        %v211 = vsel %vm210, %v209, %v206
        %v214 = vsel %vm210, %v206, %v209
        %v215 = vld [vmem:[%s3] sm:$0x3]
        %v217 = vlaneseq
        %v218 = vshrl.u32 %v217, 7
        %v219 = vsub.s32 0, %v218
        %v220 = vrot.slane %v215, %v219
        %v221 = vlaneseq
        %v222 = vshrl.u32 %v221, 7
        %v223 = vsub.s32 1, %v222
        %v224 = vrot.slane %v215, %v223
        %v227 = vmul.f32 %v214, %v220
        %v228 = vmul.f32 %v211, %v224
        %v229 = vld [vmem:[%s1] sm:$0xff]
        %230 = vrot.lane.b32.xlu0 %v204, 16
        %v231 = vpop.permute.xlu0 %230
        %233 = vrot.lane.b32.xlu0 %v202, 16
        %v234 = vpop.permute.xlu0 %233
        %vm235 = vcmask 130048
        %v236 = vsel %vm235, %v234, %v231
        %v239 = vsel %vm235, %v231, %v234
        %s240 = scalar_lea.vmem %s3, 2
        %v241 = vld [vmem:[%s240] sm:$0x3]
        %v243 = vlaneseq
        %v244 = vshrl.u32 %v243, 7
        %v245 = vsub.s32 0, %v244
        %v246 = vrot.slane %v241, %v245
        %v247 = vlaneseq
        %v248 = vshrl.u32 %v247, 7
        %v249 = vsub.s32 1, %v248
        %v250 = vrot.slane %v241, %v249
        %v253 = vmul.f32 %v239, %v246
        %v254 = vmul.f32 %v236, %v250
        %s255 = scalar_lea.vmem %s1, 8
        %v256 = vld [vmem:[%s255] sm:$0xff]
        %vm257 = vcmask 31744
        %v259 = vsel %vm257, %v256, 0
        %vm261 = vcmask 1043456
        %v263 = vsel %vm261, %v253, 0
        %v266 = vsel %vm261, %v254, 0
        %268 = vmatprep.subr.mxu0 %v266
        %269 = vmatpush1.msra.mxu0 %v263
        %270 = vmatprep.subr.mxu0 0.0
        %271 = vmatpush1.msra.mxu0 0.0
        %272 = vmatprep.subr.mxu0 0.0
        %273 = vmatpush1.msra.mxu0 0.0
        %274 = vmatprep.subr.mxu0 0.0
        %275 = vmatpush1.msra.mxu0 0.0
        %276 = vmatprep.subr.mxu0 0.0
        %277 = vmatpush1.msra.mxu0 0.0
        %278 = vmatprep.subr.mxu0 0.0
        %279 = vmatpush1.msra.mxu0 0.0
        %280 = vmatprep.subr.mxu0 0.0
        %281 = vmatpush1.msra.mxu0 0.0
        %282 = vmatprep.subr.mxu0 0.0
        %283 = vmatpush1.msra.mxu0 0.0
        %284 = vmatprep.subr.mxu0 0.0
        %285 = vmatpush1.msra.mxu0 0.0
        %286 = vmatprep.subr.mxu0 0.0
        %287 = vmatpush1.msra.mxu0 0.0
        %288 = vmatprep.subr.mxu0 0.0
        %289 = vmatpush1.msra.mxu0 0.0
        %290 = vmatprep.subr.mxu0 0.0
        %291 = vmatpush1.msra.mxu0 0.0
        %292 = vmatprep.subr.mxu0 0.0
        %293 = vmatpush1.msra.mxu0 0.0
        %294 = vmatprep.subr.mxu0 0.0
        %295 = vmatpush1.msra.mxu0 0.0
        %296 = vmatprep.subr.mxu0 0.0
        %297 = vmatpush1.msra.mxu0 0.0
        %298 = vmatprep.subr.mxu0 0.0
        %299 = vmatpush1.msra.mxu0 0.0
        %300 = vmatprep.subr.mxu0 0.0
        %301 = vmatpush1.msra.mxu0 0.0
        %302 = vmatprep.subr.mxu0 0.0
        %303 = vmatpush1.msra.mxu0 0.0
        %304 = vmatprep.subr.mxu0 0.0
        %305 = vmatpush1.msra.mxu0 0.0
        %306 = vmatprep.subr.mxu0 0.0
        %307 = vmatpush1.msra.mxu0 0.0
        %308 = vmatprep.subr.mxu0 0.0
        %309 = vmatpush1.msra.mxu0 0.0
        %310 = vmatprep.subr.mxu0 0.0
        %311 = vmatpush1.msra.mxu0 0.0
        %312 = vmatprep.subr.mxu0 0.0
        %313 = vmatpush1.msra.mxu0 0.0
        %314 = vmatprep.subr.mxu0 0.0
        %315 = vmatpush1.msra.mxu0 0.0
        %316 = vmatprep.subr.mxu0 0.0
        %317 = vmatpush1.msra.mxu0 0.0
        %318 = vmatprep.subr.mxu0 0.0
        %319 = vmatpush1.msra.mxu0 0.0
        %320 = vmatprep.subr.mxu0 0.0
        %321 = vmatpush1.msra.mxu0 0.0
        %322 = vmatprep.subr.mxu0 0.0
        %323 = vmatpush1.msra.mxu0 0.0
        %324 = vmatprep.subr.mxu0 0.0
        %325 = vmatpush1.msra.mxu0 0.0
        %326 = vmatprep.subr.mxu0 0.0
        %327 = vmatpush1.msra.mxu0 0.0
        %328 = vmatprep.subr.mxu0 0.0
        %329 = vmatpush1.msra.mxu0 0.0
        %330 = vmatprep.subr.mxu0 0.0
        %331 = vmatpush1.msra.mxu0 0.0
        %332 = vmatprep.mubr.f32.mxu0 0.0
        %333 = vmatmul.mubr.f32.gmra.mrb[0].mxu0 %v259
        %v334 = vpop.f32.mrb[0].mxu0
        %v335 = vadd.f32 0.0, %v334
        %v336 = vpop.f32.mrb[0].mxu0
        %v337 = vadd.f32 0.0, %v336
        %338 = vdwg.mxu0
        %v340 = vsel %vm257, %v229, 0
        %v343 = vsel %vm261, %v227, 0
        %v346 = vsel %vm261, %v228, 0
        %348 = vmatprep.subr.mxu0 %v346
        %349 = vmatpush1.msra.mxu0 %v343
        %350 = vmatprep.subr.mxu0 0.0
        %351 = vmatpush1.msra.mxu0 0.0
        %352 = vmatprep.subr.mxu0 0.0
        %353 = vmatpush1.msra.mxu0 0.0
        %354 = vmatprep.subr.mxu0 0.0
        %355 = vmatpush1.msra.mxu0 0.0
        %356 = vmatprep.subr.mxu0 0.0
        %357 = vmatpush1.msra.mxu0 0.0
        %358 = vmatprep.subr.mxu0 0.0
        %359 = vmatpush1.msra.mxu0 0.0
        %360 = vmatprep.subr.mxu0 0.0
        %361 = vmatpush1.msra.mxu0 0.0
        %362 = vmatprep.subr.mxu0 0.0
        %363 = vmatpush1.msra.mxu0 0.0
        %364 = vmatprep.subr.mxu0 0.0
        %365 = vmatpush1.msra.mxu0 0.0
        %366 = vmatprep.subr.mxu0 0.0
        %367 = vmatpush1.msra.mxu0 0.0
        %368 = vmatprep.subr.mxu0 0.0
        %369 = vmatpush1.msra.mxu0 0.0
        %370 = vmatprep.subr.mxu0 0.0
        %371 = vmatpush1.msra.mxu0 0.0
        %372 = vmatprep.subr.mxu0 0.0
        %373 = vmatpush1.msra.mxu0 0.0
        %374 = vmatprep.subr.mxu0 0.0
        %375 = vmatpush1.msra.mxu0 0.0
        %376 = vmatprep.subr.mxu0 0.0
        %377 = vmatpush1.msra.mxu0 0.0
        %378 = vmatprep.subr.mxu0 0.0
        %379 = vmatpush1.msra.mxu0 0.0
        %380 = vmatprep.subr.mxu0 0.0
        %381 = vmatpush1.msra.mxu0 0.0
        %382 = vmatprep.subr.mxu0 0.0
        %383 = vmatpush1.msra.mxu0 0.0
        %384 = vmatprep.subr.mxu0 0.0
        %385 = vmatpush1.msra.mxu0 0.0
        %386 = vmatprep.subr.mxu0 0.0
        %387 = vmatpush1.msra.mxu0 0.0
        %388 = vmatprep.subr.mxu0 0.0
        %389 = vmatpush1.msra.mxu0 0.0
        %390 = vmatprep.subr.mxu0 0.0
        %391 = vmatpush1.msra.mxu0 0.0
        %392 = vmatprep.subr.mxu0 0.0
        %393 = vmatpush1.msra.mxu0 0.0
        %394 = vmatprep.subr.mxu0 0.0
        %395 = vmatpush1.msra.mxu0 0.0
        %396 = vmatprep.subr.mxu0 0.0
        %397 = vmatpush1.msra.mxu0 0.0
        %398 = vmatprep.subr.mxu0 0.0
        %399 = vmatpush1.msra.mxu0 0.0
        %400 = vmatprep.subr.mxu0 0.0
        %401 = vmatpush1.msra.mxu0 0.0
        %402 = vmatprep.subr.mxu0 0.0
        %403 = vmatpush1.msra.mxu0 0.0
        %404 = vmatprep.subr.mxu0 0.0
        %405 = vmatpush1.msra.mxu0 0.0
        %406 = vmatprep.subr.mxu0 0.0
        %407 = vmatpush1.msra.mxu0 0.0
        %408 = vmatprep.subr.mxu0 0.0
        %409 = vmatpush1.msra.mxu0 0.0
        %410 = vmatprep.subr.mxu0 0.0
        %411 = vmatpush1.msra.mxu0 0.0
        %412 = vmatprep.mubr.f32.mxu0 0.0
        %413 = vmatmul.mubr.f32.gmra.mrb[0].mxu0 %v340
        %v414 = vpop.f32.mrb[0].mxu0
        %v415 = vadd.f32 %v335, %v414
        %v416 = vpop.f32.mrb[0].mxu0
        %v417 = vadd.f32 %v337, %v416
        %418 = vdwg.mxu0
        %419 = vrot.lane.b32.xlu0 %v204, 15
        %v420 = vpop.permute.xlu0 %419
        %422 = vrot.lane.b32.xlu0 %v202, 15
        %v423 = vpop.permute.xlu0 %422
        %vm424 = vcmask 121856
        %v425 = vsel %vm424, %v423, %v420
        %v428 = vsel %vm424, %v420, %v423
        %s429 = scalar_lea.vmem %s3, 4
        %v430 = vld [vmem:[%s429] sm:$0x3]
        %v432 = vlaneseq
        %v433 = vshrl.u32 %v432, 7
        %v434 = vsub.s32 0, %v433
        %v435 = vrot.slane %v430, %v434
        %v436 = vlaneseq
        %v437 = vshrl.u32 %v436, 7
        %v438 = vsub.s32 1, %v437
        %v439 = vrot.slane %v430, %v438
        %v442 = vmul.f32 %v428, %v435
        %v443 = vmul.f32 %v425, %v439
        %s444 = scalar_lea.vmem %s1, 16
        %v445 = vld [vmem:[%s444] sm:$0xff]
        %v447 = vsel %vm257, %v445, 0
        %v450 = vsel %vm261, %v442, 0
        %v453 = vsel %vm261, %v443, 0
        %455 = vmatprep.subr.mxu0 %v453
        %456 = vmatpush1.msra.mxu0 %v450
        %457 = vmatprep.subr.mxu0 0.0
        %458 = vmatpush1.msra.mxu0 0.0
        %459 = vmatprep.subr.mxu0 0.0
        %460 = vmatpush1.msra.mxu0 0.0
        %461 = vmatprep.subr.mxu0 0.0
        %462 = vmatpush1.msra.mxu0 0.0
        %463 = vmatprep.subr.mxu0 0.0
        %464 = vmatpush1.msra.mxu0 0.0
        %465 = vmatprep.subr.mxu0 0.0
        %466 = vmatpush1.msra.mxu0 0.0
        %467 = vmatprep.subr.mxu0 0.0
        %468 = vmatpush1.msra.mxu0 0.0
        %469 = vmatprep.subr.mxu0 0.0
        %470 = vmatpush1.msra.mxu0 0.0
        %471 = vmatprep.subr.mxu0 0.0
        %472 = vmatpush1.msra.mxu0 0.0
        %473 = vmatprep.subr.mxu0 0.0
        %474 = vmatpush1.msra.mxu0 0.0
        %475 = vmatprep.subr.mxu0 0.0
        %476 = vmatpush1.msra.mxu0 0.0
        %477 = vmatprep.subr.mxu0 0.0
        %478 = vmatpush1.msra.mxu0 0.0
        %479 = vmatprep.subr.mxu0 0.0
        %480 = vmatpush1.msra.mxu0 0.0
        %481 = vmatprep.subr.mxu0 0.0
        %482 = vmatpush1.msra.mxu0 0.0
        %483 = vmatprep.subr.mxu0 0.0
        %484 = vmatpush1.msra.mxu0 0.0
        %485 = vmatprep.subr.mxu0 0.0
        %486 = vmatpush1.msra.mxu0 0.0
        %487 = vmatprep.subr.mxu0 0.0
        %488 = vmatpush1.msra.mxu0 0.0
        %489 = vmatprep.subr.mxu0 0.0
        %490 = vmatpush1.msra.mxu0 0.0
        %491 = vmatprep.subr.mxu0 0.0
        %492 = vmatpush1.msra.mxu0 0.0
        %493 = vmatprep.subr.mxu0 0.0
        %494 = vmatpush1.msra.mxu0 0.0
        %495 = vmatprep.subr.mxu0 0.0
        %496 = vmatpush1.msra.mxu0 0.0
        %497 = vmatprep.subr.mxu0 0.0
        %498 = vmatpush1.msra.mxu0 0.0
        %499 = vmatprep.subr.mxu0 0.0
        %500 = vmatpush1.msra.mxu0 0.0
        %501 = vmatprep.subr.mxu0 0.0
        %502 = vmatpush1.msra.mxu0 0.0
        %503 = vmatprep.subr.mxu0 0.0
        %504 = vmatpush1.msra.mxu0 0.0
        %505 = vmatprep.subr.mxu0 0.0
        %506 = vmatpush1.msra.mxu0 0.0
        %507 = vmatprep.subr.mxu0 0.0
        %508 = vmatpush1.msra.mxu0 0.0
        %509 = vmatprep.subr.mxu0 0.0
        %510 = vmatpush1.msra.mxu0 0.0
        %511 = vmatprep.subr.mxu0 0.0
        %512 = vmatpush1.msra.mxu0 0.0
        %513 = vmatprep.subr.mxu0 0.0
        %514 = vmatpush1.msra.mxu0 0.0
        %515 = vmatprep.subr.mxu0 0.0
        %516 = vmatpush1.msra.mxu0 0.0
        %517 = vmatprep.subr.mxu0 0.0
        %518 = vmatpush1.msra.mxu0 0.0
        %519 = vmatprep.mubr.f32.mxu0 0.0
        %520 = vmatmul.mubr.f32.gmra.mrb[0].mxu0 %v447
        %v521 = vpop.f32.mrb[0].mxu0
        %v522 = vadd.f32 0.0, %v521
        %v523 = vpop.f32.mrb[0].mxu0
        %v524 = vadd.f32 0.0, %v523
        %525 = vdwg.mxu0
        %v526 = vadd.f32 %v415, %v522
        %v527 = vadd.f32 %v417, %v524
        %528 = vrot.lane.b32.xlu0 %v204, 1
        %v529 = vpop.permute.xlu0 %528
        %531 = vrot.lane.b32.xlu0 %v202, 1
        %v532 = vpop.permute.xlu0 %531
        %vm533 = vcmask 7168
        %v534 = vsel %vm533, %v532, %v529
        %v537 = vsel %vm533, %v529, %v532
        %s538 = scalar_lea.vmem %s3, 6
        %v539 = vld [vmem:[%s538] sm:$0x3]
        %v541 = vlaneseq
        %v542 = vshrl.u32 %v541, 7
        %v543 = vsub.s32 0, %v542
        %v544 = vrot.slane %v539, %v543
        %v545 = vlaneseq
        %v546 = vshrl.u32 %v545, 7
        %v547 = vsub.s32 1, %v546
        %v548 = vrot.slane %v539, %v547
        %v551 = vmul.f32 %v537, %v544
        %v552 = vmul.f32 %v534, %v548
        %s553 = scalar_lea.vmem %s1, 24
        %v554 = vld [vmem:[%s553] sm:$0xff]
        %v556 = vsel %vm257, %v554, 0
        %v559 = vsel %vm261, %v551, 0
        %v562 = vsel %vm261, %v552, 0
        %564 = vmatprep.subr.mxu0 %v562
        %565 = vmatpush1.msra.mxu0 %v559
        %566 = vmatprep.subr.mxu0 0.0
        %567 = vmatpush1.msra.mxu0 0.0
        %568 = vmatprep.subr.mxu0 0.0
        %569 = vmatpush1.msra.mxu0 0.0
        %570 = vmatprep.subr.mxu0 0.0
        %571 = vmatpush1.msra.mxu0 0.0
        %572 = vmatprep.subr.mxu0 0.0
        %573 = vmatpush1.msra.mxu0 0.0
        %574 = vmatprep.subr.mxu0 0.0
        %575 = vmatpush1.msra.mxu0 0.0
        %576 = vmatprep.subr.mxu0 0.0
        %577 = vmatpush1.msra.mxu0 0.0
        %578 = vmatprep.subr.mxu0 0.0
        %579 = vmatpush1.msra.mxu0 0.0
        %580 = vmatprep.subr.mxu0 0.0
        %581 = vmatpush1.msra.mxu0 0.0
        %582 = vmatprep.subr.mxu0 0.0
        %583 = vmatpush1.msra.mxu0 0.0
        %584 = vmatprep.subr.mxu0 0.0
        %585 = vmatpush1.msra.mxu0 0.0
        %586 = vmatprep.subr.mxu0 0.0
        %587 = vmatpush1.msra.mxu0 0.0
        %588 = vmatprep.subr.mxu0 0.0
        %589 = vmatpush1.msra.mxu0 0.0
        %590 = vmatprep.subr.mxu0 0.0
        %591 = vmatpush1.msra.mxu0 0.0
        %592 = vmatprep.subr.mxu0 0.0
        %593 = vmatpush1.msra.mxu0 0.0
        %594 = vmatprep.subr.mxu0 0.0
        %595 = vmatpush1.msra.mxu0 0.0
        %596 = vmatprep.subr.mxu0 0.0
        %597 = vmatpush1.msra.mxu0 0.0
        %598 = vmatprep.subr.mxu0 0.0
        %599 = vmatpush1.msra.mxu0 0.0
        %600 = vmatprep.subr.mxu0 0.0
        %601 = vmatpush1.msra.mxu0 0.0
        %602 = vmatprep.subr.mxu0 0.0
        %603 = vmatpush1.msra.mxu0 0.0
        %604 = vmatprep.subr.mxu0 0.0
        %605 = vmatpush1.msra.mxu0 0.0
        %606 = vmatprep.subr.mxu0 0.0
        %607 = vmatpush1.msra.mxu0 0.0
        %608 = vmatprep.subr.mxu0 0.0
        %609 = vmatpush1.msra.mxu0 0.0
        %610 = vmatprep.subr.mxu0 0.0
        %611 = vmatpush1.msra.mxu0 0.0
        %612 = vmatprep.subr.mxu0 0.0
        %613 = vmatpush1.msra.mxu0 0.0
        %614 = vmatprep.subr.mxu0 0.0
        %615 = vmatpush1.msra.mxu0 0.0
        %616 = vmatprep.subr.mxu0 0.0
        %617 = vmatpush1.msra.mxu0 0.0
        %618 = vmatprep.subr.mxu0 0.0
        %619 = vmatpush1.msra.mxu0 0.0
        %620 = vmatprep.subr.mxu0 0.0
        %621 = vmatpush1.msra.mxu0 0.0
        %622 = vmatprep.subr.mxu0 0.0
        %623 = vmatpush1.msra.mxu0 0.0
        %624 = vmatprep.subr.mxu0 0.0
        %625 = vmatpush1.msra.mxu0 0.0
        %626 = vmatprep.subr.mxu0 0.0
        %627 = vmatpush1.msra.mxu0 0.0
        %628 = vmatprep.mubr.f32.mxu0 0.0
        %629 = vmatmul.mubr.f32.gmra.mrb[0].mxu0 %v556
        %v630 = vpop.f32.mrb[0].mxu0
        %v631 = vadd.f32 0.0, %v630
        %v632 = vpop.f32.mrb[0].mxu0
        %v633 = vadd.f32 0.0, %v632
        %634 = vdwg.mxu0
        %v635 = vadd.f32 %v526, %v631
        %v636 = vadd.f32 %v527, %v633
        %s637 = scalar_lea.vmem %s3, 8
        %v638 = vld [vmem:[%s637] sm:$0x3]
        %v640 = vlaneseq
        %v641 = vshrl.u32 %v640, 7
        %v642 = vsub.s32 0, %v641
        %v643 = vrot.slane %v638, %v642
        %v644 = vlaneseq
        %v645 = vshrl.u32 %v644, 7
        %v646 = vsub.s32 1, %v645
        %v647 = vrot.slane %v638, %v646
        %v648 = vcombine.low %v643, %v647
        %v650 = vmul.f32 %v202, %v648
        %s651 = scalar_lea.vmem %s1, 32
        %v652 = vld [vmem:[%s651] sm:$0xff]
        %v654 = vcombine.high %v650, %v650
        %v656 = vsel %vm257, %v652, 0
        %v658 = vsel %vm261, %v650, 0
        %v660 = vsel %vm261, %v654, 0
        %662 = vmatprep.subr.mxu0 %v660
        %663 = vmatpush1.msra.mxu0 %v658
        %664 = vmatprep.subr.mxu0 0.0
        %665 = vmatpush1.msra.mxu0 0.0
        %666 = vmatprep.subr.mxu0 0.0
        %667 = vmatpush1.msra.mxu0 0.0
        %668 = vmatprep.subr.mxu0 0.0
        %669 = vmatpush1.msra.mxu0 0.0
        %670 = vmatprep.subr.mxu0 0.0
        %671 = vmatpush1.msra.mxu0 0.0
        %672 = vmatprep.subr.mxu0 0.0
        %673 = vmatpush1.msra.mxu0 0.0
        %674 = vmatprep.subr.mxu0 0.0
        %675 = vmatpush1.msra.mxu0 0.0
        %676 = vmatprep.subr.mxu0 0.0
        %677 = vmatpush1.msra.mxu0 0.0
        %678 = vmatprep.subr.mxu0 0.0
        %679 = vmatpush1.msra.mxu0 0.0
        %680 = vmatprep.subr.mxu0 0.0
        %681 = vmatpush1.msra.mxu0 0.0
        %682 = vmatprep.subr.mxu0 0.0
        %683 = vmatpush1.msra.mxu0 0.0
        %684 = vmatprep.subr.mxu0 0.0
        %685 = vmatpush1.msra.mxu0 0.0
        %686 = vmatprep.subr.mxu0 0.0
        %687 = vmatpush1.msra.mxu0 0.0
        %688 = vmatprep.subr.mxu0 0.0
        %689 = vmatpush1.msra.mxu0 0.0
        %690 = vmatprep.subr.mxu0 0.0
        %691 = vmatpush1.msra.mxu0 0.0
        %692 = vmatprep.subr.mxu0 0.0
        %693 = vmatpush1.msra.mxu0 0.0
        %694 = vmatprep.subr.mxu0 0.0
        %695 = vmatpush1.msra.mxu0 0.0
        %696 = vmatprep.subr.mxu0 0.0
        %697 = vmatpush1.msra.mxu0 0.0
        %698 = vmatprep.subr.mxu0 0.0
        %699 = vmatpush1.msra.mxu0 0.0
        %700 = vmatprep.subr.mxu0 0.0
        %701 = vmatpush1.msra.mxu0 0.0
        %702 = vmatprep.subr.mxu0 0.0
        %703 = vmatpush1.msra.mxu0 0.0
        %704 = vmatprep.subr.mxu0 0.0
        %705 = vmatpush1.msra.mxu0 0.0
        %706 = vmatprep.subr.mxu0 0.0
        %707 = vmatpush1.msra.mxu0 0.0
        %708 = vmatprep.subr.mxu0 0.0
        %709 = vmatpush1.msra.mxu0 0.0
        %710 = vmatprep.subr.mxu0 0.0
        %711 = vmatpush1.msra.mxu0 0.0
        %712 = vmatprep.subr.mxu0 0.0
        %713 = vmatpush1.msra.mxu0 0.0
        %714 = vmatprep.subr.mxu0 0.0
        %715 = vmatpush1.msra.mxu0 0.0
        %716 = vmatprep.subr.mxu0 0.0
        %717 = vmatpush1.msra.mxu0 0.0
        %718 = vmatprep.subr.mxu0 0.0
        %719 = vmatpush1.msra.mxu0 0.0
        %720 = vmatprep.subr.mxu0 0.0
        %721 = vmatpush1.msra.mxu0 0.0
        %722 = vmatprep.subr.mxu0 0.0
        %723 = vmatpush1.msra.mxu0 0.0
        %724 = vmatprep.subr.mxu0 0.0
        %725 = vmatpush1.msra.mxu0 0.0
        %726 = vmatprep.mubr.f32.mxu0 0.0
        %727 = vmatmul.mubr.f32.gmra.mrb[0].mxu0 %v656
        %v728 = vpop.f32.mrb[0].mxu0
        %v729 = vadd.f32 0.0, %v728
        %v730 = vpop.f32.mrb[0].mxu0
        %v731 = vadd.f32 0.0, %v730
        %732 = vdwg.mxu0
        %v733 = vadd.f32 %v635, %v729
        %v734 = vadd.f32 %v636, %v731
        %735 = vrot.lane.b32.xlu0 %v202, 127
        %v736 = vpop.permute.xlu0 %735
        %737 = vrot.lane.b32.xlu0 %v204, 127
        %v738 = vpop.permute.xlu0 %737
        %vm739 = vcmask 1039360
        %v740 = vsel %vm739, %v736, %v738
        %v744 = vsel %vm739, %v738, %v736
        %s745 = scalar_lea.vmem %s3, 10
        %v746 = vld [vmem:[%s745] sm:$0x3]
        %v748 = vlaneseq
        %v749 = vshrl.u32 %v748, 7
        %v750 = vsub.s32 0, %v749
        %v751 = vrot.slane %v746, %v750
        %v752 = vlaneseq
        %v753 = vshrl.u32 %v752, 7
        %v754 = vsub.s32 1, %v753
        %v755 = vrot.slane %v746, %v754
        %v758 = vmul.f32 %v740, %v751
        %v759 = vmul.f32 %v744, %v755
        %s760 = scalar_lea.vmem %s1, 40
        %v761 = vld [vmem:[%s760] sm:$0xff]
        %v763 = vsel %vm257, %v761, 0
        %v766 = vsel %vm261, %v758, 0
        %v769 = vsel %vm261, %v759, 0
        %771 = vmatprep.subr.mxu0 %v769
        %772 = vmatpush1.msra.mxu0 %v766
        %773 = vmatprep.subr.mxu0 0.0
        %774 = vmatpush1.msra.mxu0 0.0
        %775 = vmatprep.subr.mxu0 0.0
        %776 = vmatpush1.msra.mxu0 0.0
        %777 = vmatprep.subr.mxu0 0.0
        %778 = vmatpush1.msra.mxu0 0.0
        %779 = vmatprep.subr.mxu0 0.0
        %780 = vmatpush1.msra.mxu0 0.0
        %781 = vmatprep.subr.mxu0 0.0
        %782 = vmatpush1.msra.mxu0 0.0
        %783 = vmatprep.subr.mxu0 0.0
        %784 = vmatpush1.msra.mxu0 0.0
        %785 = vmatprep.subr.mxu0 0.0
        %786 = vmatpush1.msra.mxu0 0.0
        %787 = vmatprep.subr.mxu0 0.0
        %788 = vmatpush1.msra.mxu0 0.0
        %789 = vmatprep.subr.mxu0 0.0
        %790 = vmatpush1.msra.mxu0 0.0
        %791 = vmatprep.subr.mxu0 0.0
        %792 = vmatpush1.msra.mxu0 0.0
        %793 = vmatprep.subr.mxu0 0.0
        %794 = vmatpush1.msra.mxu0 0.0
        %795 = vmatprep.subr.mxu0 0.0
        %796 = vmatpush1.msra.mxu0 0.0
        %797 = vmatprep.subr.mxu0 0.0
        %798 = vmatpush1.msra.mxu0 0.0
        %799 = vmatprep.subr.mxu0 0.0
        %800 = vmatpush1.msra.mxu0 0.0
        %801 = vmatprep.subr.mxu0 0.0
        %802 = vmatpush1.msra.mxu0 0.0
        %803 = vmatprep.subr.mxu0 0.0
        %804 = vmatpush1.msra.mxu0 0.0
        %805 = vmatprep.subr.mxu0 0.0
        %806 = vmatpush1.msra.mxu0 0.0
        %807 = vmatprep.subr.mxu0 0.0
        %808 = vmatpush1.msra.mxu0 0.0
        %809 = vmatprep.subr.mxu0 0.0
        %810 = vmatpush1.msra.mxu0 0.0
        %811 = vmatprep.subr.mxu0 0.0
        %812 = vmatpush1.msra.mxu0 0.0
        %813 = vmatprep.subr.mxu0 0.0
        %814 = vmatpush1.msra.mxu0 0.0
        %815 = vmatprep.subr.mxu0 0.0
        %816 = vmatpush1.msra.mxu0 0.0
        %817 = vmatprep.subr.mxu0 0.0
        %818 = vmatpush1.msra.mxu0 0.0
        %819 = vmatprep.subr.mxu0 0.0
        %820 = vmatpush1.msra.mxu0 0.0
        %821 = vmatprep.subr.mxu0 0.0
        %822 = vmatpush1.msra.mxu0 0.0
        %823 = vmatprep.subr.mxu0 0.0
        %824 = vmatpush1.msra.mxu0 0.0
        %825 = vmatprep.subr.mxu0 0.0
        %826 = vmatpush1.msra.mxu0 0.0
        %827 = vmatprep.subr.mxu0 0.0
        %828 = vmatpush1.msra.mxu0 0.0
        %829 = vmatprep.subr.mxu0 0.0
        %830 = vmatpush1.msra.mxu0 0.0
        %831 = vmatprep.subr.mxu0 0.0
        %832 = vmatpush1.msra.mxu0 0.0
        %833 = vmatprep.subr.mxu0 0.0
        %834 = vmatpush1.msra.mxu0 0.0
        %835 = vmatprep.mubr.f32.mxu0 0.0
        %836 = vmatmul.mubr.f32.gmra.mrb[0].mxu0 %v763
        %v837 = vpop.f32.mrb[0].mxu0
        %v838 = vadd.f32 0.0, %v837
        %v839 = vpop.f32.mrb[0].mxu0
        %v840 = vadd.f32 0.0, %v839
        %841 = vdwg.mxu0
        %v842 = vadd.f32 %v733, %v838
        %v843 = vadd.f32 %v734, %v840
        %844 = vrot.lane.b32.xlu0 %v202, 113
        %v845 = vpop.permute.xlu0 %844
        %846 = vrot.lane.b32.xlu0 %v204, 113
        %v847 = vpop.permute.xlu0 %846
        %vm848 = vcmask 924672
        %v849 = vsel %vm848, %v845, %v847
        %v853 = vsel %vm848, %v847, %v845
        %s854 = scalar_lea.vmem %s3, 12
        %v855 = vld [vmem:[%s854] sm:$0x3]
        %v857 = vlaneseq
        %v858 = vshrl.u32 %v857, 7
        %v859 = vsub.s32 0, %v858
        %v860 = vrot.slane %v855, %v859
        %v861 = vlaneseq
        %v862 = vshrl.u32 %v861, 7
        %v863 = vsub.s32 1, %v862
        %v864 = vrot.slane %v855, %v863
        %v867 = vmul.f32 %v849, %v860
        %v868 = vmul.f32 %v853, %v864
        %s869 = scalar_lea.vmem %s1, 48
        %v870 = vld [vmem:[%s869] sm:$0xff]
        %v872 = vsel %vm257, %v870, 0
        %v875 = vsel %vm261, %v867, 0
        %v878 = vsel %vm261, %v868, 0
        %880 = vmatprep.subr.mxu0 %v878
        %881 = vmatpush1.msra.mxu0 %v875
        %882 = vmatprep.subr.mxu0 0.0
        %883 = vmatpush1.msra.mxu0 0.0
        %884 = vmatprep.subr.mxu0 0.0
        %885 = vmatpush1.msra.mxu0 0.0
        %886 = vmatprep.subr.mxu0 0.0
        %887 = vmatpush1.msra.mxu0 0.0
        %888 = vmatprep.subr.mxu0 0.0
        %889 = vmatpush1.msra.mxu0 0.0
        %890 = vmatprep.subr.mxu0 0.0
        %891 = vmatpush1.msra.mxu0 0.0
        %892 = vmatprep.subr.mxu0 0.0
        %893 = vmatpush1.msra.mxu0 0.0
        %894 = vmatprep.subr.mxu0 0.0
        %895 = vmatpush1.msra.mxu0 0.0
        %896 = vmatprep.subr.mxu0 0.0
        %897 = vmatpush1.msra.mxu0 0.0
        %898 = vmatprep.subr.mxu0 0.0
        %899 = vmatpush1.msra.mxu0 0.0
        %900 = vmatprep.subr.mxu0 0.0
        %901 = vmatpush1.msra.mxu0 0.0
        %902 = vmatprep.subr.mxu0 0.0
        %903 = vmatpush1.msra.mxu0 0.0
        %904 = vmatprep.subr.mxu0 0.0
        %905 = vmatpush1.msra.mxu0 0.0
        %906 = vmatprep.subr.mxu0 0.0
        %907 = vmatpush1.msra.mxu0 0.0
        %908 = vmatprep.subr.mxu0 0.0
        %909 = vmatpush1.msra.mxu0 0.0
        %910 = vmatprep.subr.mxu0 0.0
        %911 = vmatpush1.msra.mxu0 0.0
        %912 = vmatprep.subr.mxu0 0.0
        %913 = vmatpush1.msra.mxu0 0.0
        %914 = vmatprep.subr.mxu0 0.0
        %915 = vmatpush1.msra.mxu0 0.0
        %916 = vmatprep.subr.mxu0 0.0
        %917 = vmatpush1.msra.mxu0 0.0
        %918 = vmatprep.subr.mxu0 0.0
        %919 = vmatpush1.msra.mxu0 0.0
        %920 = vmatprep.subr.mxu0 0.0
        %921 = vmatpush1.msra.mxu0 0.0
        %922 = vmatprep.subr.mxu0 0.0
        %923 = vmatpush1.msra.mxu0 0.0
        %924 = vmatprep.subr.mxu0 0.0
        %925 = vmatpush1.msra.mxu0 0.0
        %926 = vmatprep.subr.mxu0 0.0
        %927 = vmatpush1.msra.mxu0 0.0
        %928 = vmatprep.subr.mxu0 0.0
        %929 = vmatpush1.msra.mxu0 0.0
        %930 = vmatprep.subr.mxu0 0.0
        %931 = vmatpush1.msra.mxu0 0.0
        %932 = vmatprep.subr.mxu0 0.0
        %933 = vmatpush1.msra.mxu0 0.0
        %934 = vmatprep.subr.mxu0 0.0
        %935 = vmatpush1.msra.mxu0 0.0
        %936 = vmatprep.subr.mxu0 0.0
        %937 = vmatpush1.msra.mxu0 0.0
        %938 = vmatprep.subr.mxu0 0.0
        %939 = vmatpush1.msra.mxu0 0.0
        %940 = vmatprep.subr.mxu0 0.0
        %941 = vmatpush1.msra.mxu0 0.0
        %942 = vmatprep.subr.mxu0 0.0
        %943 = vmatpush1.msra.mxu0 0.0
        %944 = vmatprep.mubr.f32.mxu0 0.0
        %945 = vmatmul.mubr.f32.gmra.mrb[0].mxu0 %v872
        %v946 = vpop.f32.mrb[0].mxu0
        %v947 = vadd.f32 0.0, %v946
        %v948 = vpop.f32.mrb[0].mxu0
        %v949 = vadd.f32 0.0, %v948
        %950 = vdwg.mxu0
        %v951 = vadd.f32 %v842, %v947
        %v952 = vadd.f32 %v843, %v949
        %953 = vrot.lane.b32.xlu0 %v202, 112
        %v954 = vpop.permute.xlu0 %953
        %955 = vrot.lane.b32.xlu0 %v204, 112
        %v956 = vpop.permute.xlu0 %955
        %vm957 = vcmask 916480
        %v958 = vsel %vm957, %v954, %v956
        %v962 = vsel %vm957, %v956, %v954
        %s963 = scalar_lea.vmem %s3, 14
        %v964 = vld [vmem:[%s963] sm:$0x3]
        %v966 = vlaneseq
        %v967 = vshrl.u32 %v966, 7
        %v968 = vsub.s32 0, %v967
        %v969 = vrot.slane %v964, %v968
        %v970 = vlaneseq
        %v971 = vshrl.u32 %v970, 7
        %v972 = vsub.s32 1, %v971
        %v973 = vrot.slane %v964, %v972
        %v976 = vmul.f32 %v958, %v969
        %v977 = vmul.f32 %v962, %v973
        %s978 = scalar_lea.vmem %s1, 56
        %v979 = vld [vmem:[%s978] sm:$0xff]
        %v981 = vsel %vm257, %v979, 0
        %v984 = vsel %vm261, %v976, 0
        %v987 = vsel %vm261, %v977, 0
        %989 = vmatprep.subr.mxu0 %v987
        %990 = vmatpush1.msra.mxu0 %v984
        %991 = vmatprep.subr.mxu0 0.0
        %992 = vmatpush1.msra.mxu0 0.0
        %993 = vmatprep.subr.mxu0 0.0
        %994 = vmatpush1.msra.mxu0 0.0
        %995 = vmatprep.subr.mxu0 0.0
        %996 = vmatpush1.msra.mxu0 0.0
        %997 = vmatprep.subr.mxu0 0.0
        %998 = vmatpush1.msra.mxu0 0.0
        %999 = vmatprep.subr.mxu0 0.0
        %1000 = vmatpush1.msra.mxu0 0.0
        %1001 = vmatprep.subr.mxu0 0.0
        %1002 = vmatpush1.msra.mxu0 0.0
        %1003 = vmatprep.subr.mxu0 0.0
        %1004 = vmatpush1.msra.mxu0 0.0
        %1005 = vmatprep.subr.mxu0 0.0
        %1006 = vmatpush1.msra.mxu0 0.0
        %1007 = vmatprep.subr.mxu0 0.0
        %1008 = vmatpush1.msra.mxu0 0.0
        %1009 = vmatprep.subr.mxu0 0.0
        %1010 = vmatpush1.msra.mxu0 0.0
        %1011 = vmatprep.subr.mxu0 0.0
        %1012 = vmatpush1.msra.mxu0 0.0
        %1013 = vmatprep.subr.mxu0 0.0
        %1014 = vmatpush1.msra.mxu0 0.0
        %1015 = vmatprep.subr.mxu0 0.0
        %1016 = vmatpush1.msra.mxu0 0.0
        %1017 = vmatprep.subr.mxu0 0.0
        %1018 = vmatpush1.msra.mxu0 0.0
        %1019 = vmatprep.subr.mxu0 0.0
        %1020 = vmatpush1.msra.mxu0 0.0
        %1021 = vmatprep.subr.mxu0 0.0
        %1022 = vmatpush1.msra.mxu0 0.0
        %1023 = vmatprep.subr.mxu0 0.0
        %1024 = vmatpush1.msra.mxu0 0.0
        %1025 = vmatprep.subr.mxu0 0.0
        %1026 = vmatpush1.msra.mxu0 0.0
        %1027 = vmatprep.subr.mxu0 0.0
        %1028 = vmatpush1.msra.mxu0 0.0
        %1029 = vmatprep.subr.mxu0 0.0
        %1030 = vmatpush1.msra.mxu0 0.0
        %1031 = vmatprep.subr.mxu0 0.0
        %1032 = vmatpush1.msra.mxu0 0.0
        %1033 = vmatprep.subr.mxu0 0.0
        %1034 = vmatpush1.msra.mxu0 0.0
        %1035 = vmatprep.subr.mxu0 0.0
        %1036 = vmatpush1.msra.mxu0 0.0
        %1037 = vmatprep.subr.mxu0 0.0
        %1038 = vmatpush1.msra.mxu0 0.0
        %1039 = vmatprep.subr.mxu0 0.0
        %1040 = vmatpush1.msra.mxu0 0.0
        %1041 = vmatprep.subr.mxu0 0.0
        %1042 = vmatpush1.msra.mxu0 0.0
        %1043 = vmatprep.subr.mxu0 0.0
        %1044 = vmatpush1.msra.mxu0 0.0
        %1045 = vmatprep.subr.mxu0 0.0
        %1046 = vmatpush1.msra.mxu0 0.0
        %1047 = vmatprep.subr.mxu0 0.0
        %1048 = vmatpush1.msra.mxu0 0.0
        %1049 = vmatprep.subr.mxu0 0.0
        %1050 = vmatpush1.msra.mxu0 0.0
        %1051 = vmatprep.subr.mxu0 0.0
        %1052 = vmatpush1.msra.mxu0 0.0
        %1053 = vmatprep.mubr.f32.mxu0 0.0
        %1054 = vmatmul.mubr.f32.gmra.mrb[0].mxu0 %v981
        %v1055 = vpop.f32.mrb[0].mxu0
        %v1056 = vadd.f32 0.0, %v1055
        %v1057 = vpop.f32.mrb[0].mxu0
        %v1058 = vadd.f32 0.0, %v1057
        %1059 = vdwg.mxu0
        %v1060 = vadd.f32 %v951, %v1056
        %v1061 = vadd.f32 %v952, %v1058
        %1062 = vrot.lane.b32.xlu0 %v202, 111
        %v1063 = vpop.permute.xlu0 %1062
        %1064 = vrot.lane.b32.xlu0 %v204, 111
        %v1065 = vpop.permute.xlu0 %1064
        %vm1066 = vcmask 908288
        %v1067 = vsel %vm1066, %v1063, %v1065
        %v1071 = vsel %vm1066, %v1065, %v1063
        %s1072 = scalar_lea.vmem %s3, 16
        %v1073 = vld [vmem:[%s1072] sm:$0x3]
        %v1075 = vlaneseq
        %v1076 = vshrl.u32 %v1075, 7
        %v1077 = vsub.s32 0, %v1076
        %v1078 = vrot.slane %v1073, %v1077
        %v1079 = vlaneseq
        %v1080 = vshrl.u32 %v1079, 7
        %v1081 = vsub.s32 1, %v1080
        %v1082 = vrot.slane %v1073, %v1081
        %v1085 = vmul.f32 %v1067, %v1078
        %v1086 = vmul.f32 %v1071, %v1082
        %s1087 = scalar_lea.vmem %s1, 64
        %v1088 = vld [vmem:[%s1087] sm:$0xff]
        %v1090 = vsel %vm257, %v1088, 0
        %v1093 = vsel %vm261, %v1085, 0
        %v1096 = vsel %vm261, %v1086, 0
        %1098 = vmatprep.subr.mxu0 %v1096
        %1099 = vmatpush1.msra.mxu0 %v1093
        %1100 = vmatprep.subr.mxu0 0.0
        %1101 = vmatpush1.msra.mxu0 0.0
        %1102 = vmatprep.subr.mxu0 0.0
        %1103 = vmatpush1.msra.mxu0 0.0
        %1104 = vmatprep.subr.mxu0 0.0
        %1105 = vmatpush1.msra.mxu0 0.0
        %1106 = vmatprep.subr.mxu0 0.0
        %1107 = vmatpush1.msra.mxu0 0.0
        %1108 = vmatprep.subr.mxu0 0.0
        %1109 = vmatpush1.msra.mxu0 0.0
        %1110 = vmatprep.subr.mxu0 0.0
        %1111 = vmatpush1.msra.mxu0 0.0
        %1112 = vmatprep.subr.mxu0 0.0
        %1113 = vmatpush1.msra.mxu0 0.0
        %1114 = vmatprep.subr.mxu0 0.0
        %1115 = vmatpush1.msra.mxu0 0.0
        %1116 = vmatprep.subr.mxu0 0.0
        %1117 = vmatpush1.msra.mxu0 0.0
        %1118 = vmatprep.subr.mxu0 0.0
        %1119 = vmatpush1.msra.mxu0 0.0
        %1120 = vmatprep.subr.mxu0 0.0
        %1121 = vmatpush1.msra.mxu0 0.0
        %1122 = vmatprep.subr.mxu0 0.0
        %1123 = vmatpush1.msra.mxu0 0.0
        %1124 = vmatprep.subr.mxu0 0.0
        %1125 = vmatpush1.msra.mxu0 0.0
        %1126 = vmatprep.subr.mxu0 0.0
        %1127 = vmatpush1.msra.mxu0 0.0
        %1128 = vmatprep.subr.mxu0 0.0
        %1129 = vmatpush1.msra.mxu0 0.0
        %1130 = vmatprep.subr.mxu0 0.0
        %1131 = vmatpush1.msra.mxu0 0.0
        %1132 = vmatprep.subr.mxu0 0.0
        %1133 = vmatpush1.msra.mxu0 0.0
        %1134 = vmatprep.subr.mxu0 0.0
        %1135 = vmatpush1.msra.mxu0 0.0
        %1136 = vmatprep.subr.mxu0 0.0
        %1137 = vmatpush1.msra.mxu0 0.0
        %1138 = vmatprep.subr.mxu0 0.0
        %1139 = vmatpush1.msra.mxu0 0.0
        %1140 = vmatprep.subr.mxu0 0.0
        %1141 = vmatpush1.msra.mxu0 0.0
        %1142 = vmatprep.subr.mxu0 0.0
        %1143 = vmatpush1.msra.mxu0 0.0
        %1144 = vmatprep.subr.mxu0 0.0
        %1145 = vmatpush1.msra.mxu0 0.0
        %1146 = vmatprep.subr.mxu0 0.0
        %1147 = vmatpush1.msra.mxu0 0.0
        %1148 = vmatprep.subr.mxu0 0.0
        %1149 = vmatpush1.msra.mxu0 0.0
        %1150 = vmatprep.subr.mxu0 0.0
        %1151 = vmatpush1.msra.mxu0 0.0
        %1152 = vmatprep.subr.mxu0 0.0
        %1153 = vmatpush1.msra.mxu0 0.0
        %1154 = vmatprep.subr.mxu0 0.0
        %1155 = vmatpush1.msra.mxu0 0.0
        %1156 = vmatprep.subr.mxu0 0.0
        %1157 = vmatpush1.msra.mxu0 0.0
        %1158 = vmatprep.subr.mxu0 0.0
        %1159 = vmatpush1.msra.mxu0 0.0
        %1160 = vmatprep.subr.mxu0 0.0
        %1161 = vmatpush1.msra.mxu0 0.0
        %1162 = vmatprep.mubr.f32.mxu0 0.0
        %1163 = vmatmul.mubr.f32.gmra.mrb[0].mxu0 %v1090
        %v1164 = vpop.f32.mrb[0].mxu0
        %v1165 = vadd.f32 0.0, %v1164
        %v1166 = vpop.f32.mrb[0].mxu0
        %v1167 = vadd.f32 0.0, %v1166
        %1168 = vdwg.mxu0
        %v1169 = vadd.f32 %v1060, %v1165
        %v1170 = vadd.f32 %v1061, %v1167
        %v1171 = vmax.f32 %v1169, 0.0
        %v1172 = vmax.f32 %v1170, 0.0
        %v1173 = vmul.f32 %v1171, %v200
        %v1174 = vmul.f32 %v1172, %v200
        %1175 = vst [vmem:[%s190] sm:$0xff] %v1173
        %1176 = vst [vmem:[%s190 + $0x8] sm:$0xff] %v1174
        %s1177 = sand.u32 %s115, 1
        %s1178 = scalar_lea.sflag [#allocation3], %s1177
        %s1179 = sand.u32 %s115, 1
        %s1180 = smul.addr %s1179, 16
        %s1181 = scalar_lea.vmem [#allocation2], %s1180
        // Predicated region
        $region37: #{tpu_custom_call.1} parent=35 // pred_check
          %p1182 = pneg %p125
        $region38: #{tpu_custom_call.1} parent=35 // pred_check_branch
          %1184 = sbr.rel (%p1182) target = $region40
        $region39: #{tpu_custom_call.1} parent=35 // pred_region
          %s1186 = ssub.s32 256, 256
          %1187 = vsyncadd %s1178, %s1186
          %s1188 = smul.addr %s18, 2
          %s1189 = smul.addr %s1188, 128
          %s1190 = scalar_lea.hbm %s4, %s1189
          %s1192 = sshll.u32 %s1181, 4
          %s1193 = int_to_ptr.vmem [resolvable:$true] %s1192
          %1195 = dma.vmem_to_hbm [thread:$0]  %s1193, 256, %s1190, %s1178
        $region40: #{tpu_custom_call.1} parent=35 // pred_fallthru
          _
      $region36: #{tpu_custom_call.1} parent=5 // pred_fallthru
        _
      %p1196 = scmp.le.s32.totalorder 2, %s13
      // Predicated region
      $region41: #{tpu_custom_call.1} parent=5 // pred_check
        %p1197 = pneg %p1196
      $region42: #{tpu_custom_call.1} parent=5 // pred_check_branch
        %1199 = sbr.rel (%p1197) target = $region44
      $region43: #{tpu_custom_call.1} parent=5 // pred_region
        %s1200 = ssub.s32 %s13, 2
        // Predicated region
        $region45: #{tpu_custom_call.1} parent=43 // pred_check
          %p1201 = pneg %p131
        $region46: #{tpu_custom_call.1} parent=43 // pred_check_branch
          %1203 = sbr.rel (%p1201) target = $region48
        $region47: #{tpu_custom_call.1} parent=43 // pred_region
          %s1204 = sand.u32 %s116, 1
          %s1205 = scalar_lea.sflag [#allocation3], %s1204
          %s1206 = sand.u32 %s116, 1
          %s1207 = smul.addr %s1206, 16
          %s1208 = scalar_lea.vmem [#allocation2], %s1207
          %1209 = dma.done %s1205, 256
        $region48: #{tpu_custom_call.1} parent=43 // pred_fallthru
          _
      $region44: #{tpu_custom_call.1} parent=5 // pred_fallthru
        _
    $region6: #{tpu_custom_call.1} parent=1 // loop_footer
      %s17 = sadd.s32 1, %s13
    $region7: #{tpu_custom_call.1} parent=1 // loop_footer_branch
      %12 = sbr.rel target = $region3
    $region8: #{tpu_custom_call.1} parent=1 // loop_exit
      _
    %1210 = vsyncpa [#allocation3], 1
    %s1211 = scalar_lea.sflag [#allocation3], 1
    %1212 = vsyncpa %s1211, 1

</llo_original>
